<compile_context>
chip_gen: v6e
topology: v6e:2x2x1
jax: 0.10.0
libtpu: 0.0.40
codegen_flags: <defaults>
</compile_context>

<pallas_src>
import jax
import jax.numpy as jnp
from jax import lax
from jax.experimental import pallas as pl
from jax.experimental.pallas import tpu as pltpu

_BN_EPS = 1e-5
_LANE = 128
_SMALL_C_VPU = 32           # below this, do the 1x1 conv on the VPU instead of the MXU
_FULL_BLOCK_BYTES = 2 << 20  # single-block (no pad/tile) path if the activation fits
_LARGE_TILE_LANES = 2048     # lane-tile for the large-input path (amortizes grid step)


# ----------------------------- Pallas kernel -----------------------------

def _mm(w, x):
    """(C, C) @ (C, P) 1x1-conv matmul.

    Tiny C: unrolled VPU outer-product accumulation — avoids the serial MXU
    push/drain latency of the 6-deep matmul chain and keeps full f32 precision.
    Large C: MXU dot with bf16 operands (single-pass) and f32 accumulation.
    """
    c = x.shape[0]
    if c <= _SMALL_C_VPU:
        acc = w[:, 0:1] * x[0:1, :]
        for i in range(1, c):
            acc = acc + w[:, i:i + 1] * x[i:i + 1, :]
        return acc
    return jnp.dot(w.astype(jnp.bfloat16), x.astype(jnp.bfloat16),
                   preferred_element_type=jnp.float32)


def _double_resblock_kernel(x_ref, pp_ref, w_ref, o_ref):
    """Two applications of ResidualBlock (shared BN + shared 1x1 conv).

    Layout: x_ref / o_ref are (C, Pt): pixels on the 128-lane axis (lane-dense),
    channels on sublanes. pp_ref is (C, 4) = [scale, shift, bias, bs];
    w_ref is (2, C, C) = [W, Ws] with Ws = diag(scale) @ W.
    """
    x = x_ref[...]                        # (C, Pt) f32
    pp = pp_ref[...]                      # (C, 4)
    scale = pp[:, 0:1]                    # kept (C,1): splat at use site, ~1 vreg each
    shift = pp[:, 1:2]
    bias = pp[:, 2:3]
    bs = pp[:, 3:4]
    w = w_ref[0]                          # (C, C) raw conv weight
    ws = w_ref[1]                         # (C, C) BN-folded conv weight

    for _ in range(2):                    # the SAME ResidualBlock applied twice
        x0 = x
        h = jnp.maximum(x * scale + shift, 0.0)        # BN + ReLU          (stage 1)
        h = jnp.maximum(_mm(ws, h) + bs, 0.0)          # conv + BN + ReLU   (stage 2, folded)
        h = jnp.maximum(_mm(ws, h) + bs, 0.0)          # conv + BN + ReLU   (stage 3, folded)
        x = _mm(w, h) + bias + x0                      # final conv + skip
    o_ref[...] = x.astype(o_ref.dtype)


# ------------------------------ forward pass ------------------------------

def maskbranch19_30_forward(x_nchw, params):
    # Transpose ONCE up front so that after the pool the lane-dense (C, N*H'*W')
    # view is a free reshape (no post-pool transpose / extra HBM trip).
    x = jnp.transpose(x_nchw.astype(jnp.float32), (1, 0, 2, 3))     # (C, N, H, W)
    # TODO(synk): 3x3/s2/p1 max-pool kept as plain-JAX glue (tiny, non-tile-aligned
    #             spatial window); XLA handles it fine and it feeds the fused kernel.
    x = lax.reduce_window(
        x, -jnp.inf, lax.max,
        window_dimensions=(1, 1, 3, 3),
        window_strides=(1, 1, 2, 2),
        padding=((0, 0), (0, 0), (1, 1), (1, 1)))
    c, n, h, w = x.shape
    p = n * h * w
    cols = x.reshape(c, p)                                          # lane-dense, free

    if c * p * 4 <= _FULL_BLOCK_BYTES:
        # Small input: single full-array block — no pad, no slice, no grid split
        # (a multi-step grid would cost more in per-step overhead than the compute).
        p_pad, pt = p, p
    else:
        # Large input: pad the lane axis once and tile it in big blocks so each
        # grid step amortizes the ~0.35us per-step overhead.
        pt = _LARGE_TILE_LANES
        p_pad = ((p + pt - 1) // pt) * pt
        cols = jnp.pad(cols, ((0, 0), (0, p_pad - p)))
        # NOTE: padded columns pick up `shift`/`bs`, but the contraction is over
        # channels only and the columns are sliced off, so the result is exact.
    grid = (p_pad // pt,)
    semantics = ("parallel",) if grid[0] > 1 else ("arbitrary",)

    out = pl.pallas_call(
        _double_resblock_kernel,
        out_shape=jax.ShapeDtypeStruct((c, p_pad), jnp.float32),
        grid=grid,
        in_specs=[
            pl.BlockSpec((c, pt), lambda i: (0, i)),        # activations (lane-tiled)
            pl.BlockSpec((c, 4), lambda i: (0, 0)),         # packed per-channel params
            pl.BlockSpec((2, c, c), lambda i: (0, 0, 0)),   # packed [W, Ws]
        ],
        out_specs=pl.BlockSpec((c, pt), lambda i: (0, i)),
        compiler_params=pltpu.CompilerParams(dimension_semantics=semantics),
    )(cols, params["pp"], params["wpack"])

    if p_pad != p:
        out = out[:, :p]
    return jnp.transpose(out.reshape(c, n, h, w), (1, 0, 2, 3))     # back to NCHW


# ------------------------------ parameters ------------------------------

def make_params(key, channels):
    k1, k2, k3, k4, k5, k6 = jax.random.split(key, 6)
    w = jax.random.normal(k1, (channels, channels), jnp.float32) * (0.5 / channels ** 0.5)
    b = jax.random.normal(k2, (channels,), jnp.float32) * 0.05
    gamma = 1.0 + 0.1 * jax.random.normal(k3, (channels,), jnp.float32)
    beta = 0.1 * jax.random.normal(k4, (channels,), jnp.float32)
    mean = 0.1 * jax.random.normal(k5, (channels,), jnp.float32)
    var = 1.0 + 0.2 * jax.random.uniform(k6, (channels,), jnp.float32)
    scale = gamma / jnp.sqrt(var + _BN_EPS)          # inference-mode BN folded to affine
    shift = beta - mean * scale
    # Algebraic fold for the BN-after-conv stages:
    #   scale*(W@h + b) + shift == (diag(scale)@W)@h + (scale*b + shift)
    ws = scale[:, None] * w
    bs = scale * b + shift
    pp = jnp.stack([scale, shift, b, bs], axis=1)    # (C, 4) packed per-channel params
    wpack = jnp.stack([w, ws], axis=0)               # (2, C, C) packed weights
    return {
        "pp": pp, "wpack": wpack,
        # unfolded copies used only by the pure-JAX reference:
        "w": w, "b": b, "scale": scale, "shift": shift,
    }


# ---------------------------- pure-JAX reference ----------------------------

def _reference_forward(x_nchw, params):
    x = lax.reduce_window(
        x_nchw.astype(jnp.float32), -jnp.inf, lax.max,
        window_dimensions=(1, 1, 3, 3),
        window_strides=(1, 1, 2, 2),
        padding=((0, 0), (0, 0), (1, 1), (1, 1)))
    scale = params["scale"].reshape(1, -1, 1, 1)
    shift = params["shift"].reshape(1, -1, 1, 1)
    bias = params["b"].reshape(1, -1, 1, 1)
    w = params["w"]
    for _ in range(2):
        y = x
        for _ in range(3):
            x = jnp.maximum(x * scale + shift, 0.0)
            x = jnp.einsum("oi,nihw->nohw", w, x,
                           precision=lax.Precision.HIGHEST) + bias
        x = x + y
    return x


# ---------------------------------- main ----------------------------------

if __name__ == "__main__":
    key = jax.random.PRNGKey(0)
    k_params, k_x = jax.random.split(key)

    channels = 8
    batch = 2
    # 19x19 is the feature-map size this branch sees in the full SSD model;
    # maxpool(3, 2, 1) takes it to 10x10 (exercises the non-128-aligned lane path).
    x = jax.random.normal(k_x, (batch, channels, 19, 19), jnp.float32)

    params = make_params(k_params, channels)

    fwd = jax.jit(maskbranch19_30_forward)
    out = jax.block_until_ready(fwd(x, params))

    assert out.shape == (batch, channels, 10, 10), out.shape
    assert bool(jnp.all(jnp.isfinite(out)))

    ref = jax.block_until_ready(_reference_forward(x, params))
    max_diff = float(jnp.max(jnp.abs(out - ref)))
    assert max_diff < 5e-3, f"mismatch vs reference: {max_diff}"

    print("KERNEL_OK")
</pallas_src>

<mosaic_0001>
module attributes {stable_mosaic.version = 11 : i64} {
  func.func @_double_resblock_kernel(%arg0: i32, %arg1: memref<8x200xf32, #tpu.memory_space<vmem>>, %arg2: memref<8x4xf32, #tpu.memory_space<vmem>>, %arg3: memref<2x8x8xf32, #tpu.memory_space<vmem>>, %arg4: memref<8x200xf32, #tpu.memory_space<vmem>>) attributes {dimension_semantics = [#tpu.dimension_semantics<arbitrary>], iteration_bounds = array<i64: 1>, scalar_prefetch = 0 : i64, scratch_operands = 0 : i64, tpu.core_type = #tpu.core_type<tc>, window_params = [{transform_indices = @transform_0, window_bounds = array<i64: 8, 200>}, {pipeline_mode = #tpu.pipeline_mode<synchronous>, transform_indices = @transform_1, window_bounds = array<i64: 8, 4>}, {pipeline_mode = #tpu.pipeline_mode<synchronous>, transform_indices = @transform_2, window_bounds = array<i64: 2, 8, 8>}, {transform_indices = @transform_3, window_bounds = array<i64: 8, 200>}]} {
    %c0 = arith.constant 0 : index
    %c0_0 = arith.constant 0 : index
    %0 = vector.load %arg1[%c0, %c0_0] : memref<8x200xf32, #tpu.memory_space<vmem>>, vector<8x200xf32>
    %c0_1 = arith.constant 0 : index
    %c0_2 = arith.constant 0 : index
    %1 = vector.load %arg2[%c0_1, %c0_2] : memref<8x4xf32, #tpu.memory_space<vmem>>, vector<8x4xf32>
    %2 = vector.extract_strided_slice %1 {offsets = [0, 0], sizes = [8, 1], strides = [1, 1]} : vector<8x4xf32> to vector<8x1xf32>
    %3 = vector.extract_strided_slice %1 {offsets = [0, 1], sizes = [8, 1], strides = [1, 1]} : vector<8x4xf32> to vector<8x1xf32>
    %4 = vector.extract_strided_slice %1 {offsets = [0, 2], sizes = [8, 1], strides = [1, 1]} : vector<8x4xf32> to vector<8x1xf32>
    %5 = vector.extract_strided_slice %1 {offsets = [0, 3], sizes = [8, 1], strides = [1, 1]} : vector<8x4xf32> to vector<8x1xf32>
    %c0_3 = arith.constant 0 : index
    %c0_4 = arith.constant 0 : index
    %c0_5 = arith.constant 0 : index
    %6 = vector.load %arg3[%c0_3, %c0_4, %c0_5] : memref<2x8x8xf32, #tpu.memory_space<vmem>>, vector<1x8x8xf32>
    %7 = vector.shape_cast %6 : vector<1x8x8xf32> to vector<8x8xf32>
    %c1 = arith.constant 1 : index
    %c0_6 = arith.constant 0 : index
    %c0_7 = arith.constant 0 : index
    %8 = vector.load %arg3[%c1, %c0_6, %c0_7] : memref<2x8x8xf32, #tpu.memory_space<vmem>>, vector<1x8x8xf32>
    %9 = vector.shape_cast %8 : vector<1x8x8xf32> to vector<8x8xf32>
    %10 = vector.broadcast %2 : vector<8x1xf32> to vector<8x200xf32>
    %11 = arith.mulf %0, %10 : vector<8x200xf32>
    %12 = vector.broadcast %3 : vector<8x1xf32> to vector<8x200xf32>
    %13 = arith.addf %11, %12 : vector<8x200xf32>
    %cst = arith.constant 0.000000e+00 : f32
    %14 = vector.broadcast %cst : f32 to vector<8x200xf32>
    %15 = arith.maximumf %13, %14 : vector<8x200xf32>
    %16 = vector.extract_strided_slice %9 {offsets = [0, 0], sizes = [8, 1], strides = [1, 1]} : vector<8x8xf32> to vector<8x1xf32>
    %17 = vector.extract_strided_slice %15 {offsets = [0, 0], sizes = [1, 200], strides = [1, 1]} : vector<8x200xf32> to vector<1x200xf32>
    %18 = vector.broadcast %16 : vector<8x1xf32> to vector<8x200xf32>
    %19 = vector.broadcast %17 : vector<1x200xf32> to vector<8x200xf32>
    %20 = arith.mulf %18, %19 : vector<8x200xf32>
    %21 = vector.extract_strided_slice %9 {offsets = [0, 1], sizes = [8, 1], strides = [1, 1]} : vector<8x8xf32> to vector<8x1xf32>
    %22 = vector.extract_strided_slice %15 {offsets = [1, 0], sizes = [1, 200], strides = [1, 1]} : vector<8x200xf32> to vector<1x200xf32>
    %23 = vector.broadcast %21 : vector<8x1xf32> to vector<8x200xf32>
    %24 = vector.broadcast %22 : vector<1x200xf32> to vector<8x200xf32>
    %25 = arith.mulf %23, %24 : vector<8x200xf32>
    %26 = arith.addf %20, %25 : vector<8x200xf32>
    %27 = vector.extract_strided_slice %9 {offsets = [0, 2], sizes = [8, 1], strides = [1, 1]} : vector<8x8xf32> to vector<8x1xf32>
    %28 = vector.extract_strided_slice %15 {offsets = [2, 0], sizes = [1, 200], strides = [1, 1]} : vector<8x200xf32> to vector<1x200xf32>
    %29 = vector.broadcast %27 : vector<8x1xf32> to vector<8x200xf32>
    %30 = vector.broadcast %28 : vector<1x200xf32> to vector<8x200xf32>
    %31 = arith.mulf %29, %30 : vector<8x200xf32>
    %32 = arith.addf %26, %31 : vector<8x200xf32>
    %33 = vector.extract_strided_slice %9 {offsets = [0, 3], sizes = [8, 1], strides = [1, 1]} : vector<8x8xf32> to vector<8x1xf32>
    %34 = vector.extract_strided_slice %15 {offsets = [3, 0], sizes = [1, 200], strides = [1, 1]} : vector<8x200xf32> to vector<1x200xf32>
    %35 = vector.broadcast %33 : vector<8x1xf32> to vector<8x200xf32>
    %36 = vector.broadcast %34 : vector<1x200xf32> to vector<8x200xf32>
    %37 = arith.mulf %35, %36 : vector<8x200xf32>
    %38 = arith.addf %32, %37 : vector<8x200xf32>
    %39 = vector.extract_strided_slice %9 {offsets = [0, 4], sizes = [8, 1], strides = [1, 1]} : vector<8x8xf32> to vector<8x1xf32>
    %40 = vector.extract_strided_slice %15 {offsets = [4, 0], sizes = [1, 200], strides = [1, 1]} : vector<8x200xf32> to vector<1x200xf32>
    %41 = vector.broadcast %39 : vector<8x1xf32> to vector<8x200xf32>
    %42 = vector.broadcast %40 : vector<1x200xf32> to vector<8x200xf32>
    %43 = arith.mulf %41, %42 : vector<8x200xf32>
    %44 = arith.addf %38, %43 : vector<8x200xf32>
    %45 = vector.extract_strided_slice %9 {offsets = [0, 5], sizes = [8, 1], strides = [1, 1]} : vector<8x8xf32> to vector<8x1xf32>
    %46 = vector.extract_strided_slice %15 {offsets = [5, 0], sizes = [1, 200], strides = [1, 1]} : vector<8x200xf32> to vector<1x200xf32>
    %47 = vector.broadcast %45 : vector<8x1xf32> to vector<8x200xf32>
    %48 = vector.broadcast %46 : vector<1x200xf32> to vector<8x200xf32>
    %49 = arith.mulf %47, %48 : vector<8x200xf32>
    %50 = arith.addf %44, %49 : vector<8x200xf32>
    %51 = vector.extract_strided_slice %9 {offsets = [0, 6], sizes = [8, 1], strides = [1, 1]} : vector<8x8xf32> to vector<8x1xf32>
    %52 = vector.extract_strided_slice %15 {offsets = [6, 0], sizes = [1, 200], strides = [1, 1]} : vector<8x200xf32> to vector<1x200xf32>
    %53 = vector.broadcast %51 : vector<8x1xf32> to vector<8x200xf32>
    %54 = vector.broadcast %52 : vector<1x200xf32> to vector<8x200xf32>
    %55 = arith.mulf %53, %54 : vector<8x200xf32>
    %56 = arith.addf %50, %55 : vector<8x200xf32>
    %57 = vector.extract_strided_slice %9 {offsets = [0, 7], sizes = [8, 1], strides = [1, 1]} : vector<8x8xf32> to vector<8x1xf32>
    %58 = vector.extract_strided_slice %15 {offsets = [7, 0], sizes = [1, 200], strides = [1, 1]} : vector<8x200xf32> to vector<1x200xf32>
    %59 = vector.broadcast %57 : vector<8x1xf32> to vector<8x200xf32>
    %60 = vector.broadcast %58 : vector<1x200xf32> to vector<8x200xf32>
    %61 = arith.mulf %59, %60 : vector<8x200xf32>
    %62 = arith.addf %56, %61 : vector<8x200xf32>
    %63 = vector.broadcast %5 : vector<8x1xf32> to vector<8x200xf32>
    %64 = arith.addf %62, %63 : vector<8x200xf32>
    %cst_8 = arith.constant 0.000000e+00 : f32
    %65 = vector.broadcast %cst_8 : f32 to vector<8x200xf32>
    %66 = arith.maximumf %64, %65 : vector<8x200xf32>
    %67 = vector.extract_strided_slice %9 {offsets = [0, 0], sizes = [8, 1], strides = [1, 1]} : vector<8x8xf32> to vector<8x1xf32>
    %68 = vector.extract_strided_slice %66 {offsets = [0, 0], sizes = [1, 200], strides = [1, 1]} : vector<8x200xf32> to vector<1x200xf32>
    %69 = vector.broadcast %67 : vector<8x1xf32> to vector<8x200xf32>
    %70 = vector.broadcast %68 : vector<1x200xf32> to vector<8x200xf32>
    %71 = arith.mulf %69, %70 : vector<8x200xf32>
    %72 = vector.extract_strided_slice %9 {offsets = [0, 1], sizes = [8, 1], strides = [1, 1]} : vector<8x8xf32> to vector<8x1xf32>
    %73 = vector.extract_strided_slice %66 {offsets = [1, 0], sizes = [1, 200], strides = [1, 1]} : vector<8x200xf32> to vector<1x200xf32>
    %74 = vector.broadcast %72 : vector<8x1xf32> to vector<8x200xf32>
    %75 = vector.broadcast %73 : vector<1x200xf32> to vector<8x200xf32>
    %76 = arith.mulf %74, %75 : vector<8x200xf32>
    %77 = arith.addf %71, %76 : vector<8x200xf32>
    %78 = vector.extract_strided_slice %9 {offsets = [0, 2], sizes = [8, 1], strides = [1, 1]} : vector<8x8xf32> to vector<8x1xf32>
    %79 = vector.extract_strided_slice %66 {offsets = [2, 0], sizes = [1, 200], strides = [1, 1]} : vector<8x200xf32> to vector<1x200xf32>
    %80 = vector.broadcast %78 : vector<8x1xf32> to vector<8x200xf32>
    %81 = vector.broadcast %79 : vector<1x200xf32> to vector<8x200xf32>
    %82 = arith.mulf %80, %81 : vector<8x200xf32>
    %83 = arith.addf %77, %82 : vector<8x200xf32>
    %84 = vector.extract_strided_slice %9 {offsets = [0, 3], sizes = [8, 1], strides = [1, 1]} : vector<8x8xf32> to vector<8x1xf32>
    %85 = vector.extract_strided_slice %66 {offsets = [3, 0], sizes = [1, 200], strides = [1, 1]} : vector<8x200xf32> to vector<1x200xf32>
    %86 = vector.broadcast %84 : vector<8x1xf32> to vector<8x200xf32>
    %87 = vector.broadcast %85 : vector<1x200xf32> to vector<8x200xf32>
    %88 = arith.mulf %86, %87 : vector<8x200xf32>
    %89 = arith.addf %83, %88 : vector<8x200xf32>
    %90 = vector.extract_strided_slice %9 {offsets = [0, 4], sizes = [8, 1], strides = [1, 1]} : vector<8x8xf32> to vector<8x1xf32>
    %91 = vector.extract_strided_slice %66 {offsets = [4, 0], sizes = [1, 200], strides = [1, 1]} : vector<8x200xf32> to vector<1x200xf32>
    %92 = vector.broadcast %90 : vector<8x1xf32> to vector<8x200xf32>
    %93 = vector.broadcast %91 : vector<1x200xf32> to vector<8x200xf32>
    %94 = arith.mulf %92, %93 : vector<8x200xf32>
    %95 = arith.addf %89, %94 : vector<8x200xf32>
    %96 = vector.extract_strided_slice %9 {offsets = [0, 5], sizes = [8, 1], strides = [1, 1]} : vector<8x8xf32> to vector<8x1xf32>
    %97 = vector.extract_strided_slice %66 {offsets = [5, 0], sizes = [1, 200], strides = [1, 1]} : vector<8x200xf32> to vector<1x200xf32>
    %98 = vector.broadcast %96 : vector<8x1xf32> to vector<8x200xf32>
    %99 = vector.broadcast %97 : vector<1x200xf32> to vector<8x200xf32>
    %100 = arith.mulf %98, %99 : vector<8x200xf32>
    %101 = arith.addf %95, %100 : vector<8x200xf32>
    %102 = vector.extract_strided_slice %9 {offsets = [0, 6], sizes = [8, 1], strides = [1, 1]} : vector<8x8xf32> to vector<8x1xf32>
    %103 = vector.extract_strided_slice %66 {offsets = [6, 0], sizes = [1, 200], strides = [1, 1]} : vector<8x200xf32> to vector<1x200xf32>
    %104 = vector.broadcast %102 : vector<8x1xf32> to vector<8x200xf32>
    %105 = vector.broadcast %103 : vector<1x200xf32> to vector<8x200xf32>
    %106 = arith.mulf %104, %105 : vector<8x200xf32>
    %107 = arith.addf %101, %106 : vector<8x200xf32>
    %108 = vector.extract_strided_slice %9 {offsets = [0, 7], sizes = [8, 1], strides = [1, 1]} : vector<8x8xf32> to vector<8x1xf32>
    %109 = vector.extract_strided_slice %66 {offsets = [7, 0], sizes = [1, 200], strides = [1, 1]} : vector<8x200xf32> to vector<1x200xf32>
    %110 = vector.broadcast %108 : vector<8x1xf32> to vector<8x200xf32>
    %111 = vector.broadcast %109 : vector<1x200xf32> to vector<8x200xf32>
    %112 = arith.mulf %110, %111 : vector<8x200xf32>
    %113 = arith.addf %107, %112 : vector<8x200xf32>
    %114 = vector.broadcast %5 : vector<8x1xf32> to vector<8x200xf32>
    %115 = arith.addf %113, %114 : vector<8x200xf32>
    %cst_9 = arith.constant 0.000000e+00 : f32
    %116 = vector.broadcast %cst_9 : f32 to vector<8x200xf32>
    %117 = arith.maximumf %115, %116 : vector<8x200xf32>
    %118 = vector.extract_strided_slice %7 {offsets = [0, 0], sizes = [8, 1], strides = [1, 1]} : vector<8x8xf32> to vector<8x1xf32>
    %119 = vector.extract_strided_slice %117 {offsets = [0, 0], sizes = [1, 200], strides = [1, 1]} : vector<8x200xf32> to vector<1x200xf32>
    %120 = vector.broadcast %118 : vector<8x1xf32> to vector<8x200xf32>
    %121 = vector.broadcast %119 : vector<1x200xf32> to vector<8x200xf32>
    %122 = arith.mulf %120, %121 : vector<8x200xf32>
    %123 = vector.extract_strided_slice %7 {offsets = [0, 1], sizes = [8, 1], strides = [1, 1]} : vector<8x8xf32> to vector<8x1xf32>
    %124 = vector.extract_strided_slice %117 {offsets = [1, 0], sizes = [1, 200], strides = [1, 1]} : vector<8x200xf32> to vector<1x200xf32>
    %125 = vector.broadcast %123 : vector<8x1xf32> to vector<8x200xf32>
    %126 = vector.broadcast %124 : vector<1x200xf32> to vector<8x200xf32>
    %127 = arith.mulf %125, %126 : vector<8x200xf32>
    %128 = arith.addf %122, %127 : vector<8x200xf32>
    %129 = vector.extract_strided_slice %7 {offsets = [0, 2], sizes = [8, 1], strides = [1, 1]} : vector<8x8xf32> to vector<8x1xf32>
    %130 = vector.extract_strided_slice %117 {offsets = [2, 0], sizes = [1, 200], strides = [1, 1]} : vector<8x200xf32> to vector<1x200xf32>
    %131 = vector.broadcast %129 : vector<8x1xf32> to vector<8x200xf32>
    %132 = vector.broadcast %130 : vector<1x200xf32> to vector<8x200xf32>
    %133 = arith.mulf %131, %132 : vector<8x200xf32>
    %134 = arith.addf %128, %133 : vector<8x200xf32>
    %135 = vector.extract_strided_slice %7 {offsets = [0, 3], sizes = [8, 1], strides = [1, 1]} : vector<8x8xf32> to vector<8x1xf32>
    %136 = vector.extract_strided_slice %117 {offsets = [3, 0], sizes = [1, 200], strides = [1, 1]} : vector<8x200xf32> to vector<1x200xf32>
    %137 = vector.broadcast %135 : vector<8x1xf32> to vector<8x200xf32>
    %138 = vector.broadcast %136 : vector<1x200xf32> to vector<8x200xf32>
    %139 = arith.mulf %137, %138 : vector<8x200xf32>
    %140 = arith.addf %134, %139 : vector<8x200xf32>
    %141 = vector.extract_strided_slice %7 {offsets = [0, 4], sizes = [8, 1], strides = [1, 1]} : vector<8x8xf32> to vector<8x1xf32>
    %142 = vector.extract_strided_slice %117 {offsets = [4, 0], sizes = [1, 200], strides = [1, 1]} : vector<8x200xf32> to vector<1x200xf32>
    %143 = vector.broadcast %141 : vector<8x1xf32> to vector<8x200xf32>
    %144 = vector.broadcast %142 : vector<1x200xf32> to vector<8x200xf32>
    %145 = arith.mulf %143, %144 : vector<8x200xf32>
    %146 = arith.addf %140, %145 : vector<8x200xf32>
    %147 = vector.extract_strided_slice %7 {offsets = [0, 5], sizes = [8, 1], strides = [1, 1]} : vector<8x8xf32> to vector<8x1xf32>
    %148 = vector.extract_strided_slice %117 {offsets = [5, 0], sizes = [1, 200], strides = [1, 1]} : vector<8x200xf32> to vector<1x200xf32>
    %149 = vector.broadcast %147 : vector<8x1xf32> to vector<8x200xf32>
    %150 = vector.broadcast %148 : vector<1x200xf32> to vector<8x200xf32>
    %151 = arith.mulf %149, %150 : vector<8x200xf32>
    %152 = arith.addf %146, %151 : vector<8x200xf32>
    %153 = vector.extract_strided_slice %7 {offsets = [0, 6], sizes = [8, 1], strides = [1, 1]} : vector<8x8xf32> to vector<8x1xf32>
    %154 = vector.extract_strided_slice %117 {offsets = [6, 0], sizes = [1, 200], strides = [1, 1]} : vector<8x200xf32> to vector<1x200xf32>
    %155 = vector.broadcast %153 : vector<8x1xf32> to vector<8x200xf32>
    %156 = vector.broadcast %154 : vector<1x200xf32> to vector<8x200xf32>
    %157 = arith.mulf %155, %156 : vector<8x200xf32>
    %158 = arith.addf %152, %157 : vector<8x200xf32>
    %159 = vector.extract_strided_slice %7 {offsets = [0, 7], sizes = [8, 1], strides = [1, 1]} : vector<8x8xf32> to vector<8x1xf32>
    %160 = vector.extract_strided_slice %117 {offsets = [7, 0], sizes = [1, 200], strides = [1, 1]} : vector<8x200xf32> to vector<1x200xf32>
    %161 = vector.broadcast %159 : vector<8x1xf32> to vector<8x200xf32>
    %162 = vector.broadcast %160 : vector<1x200xf32> to vector<8x200xf32>
    %163 = arith.mulf %161, %162 : vector<8x200xf32>
    %164 = arith.addf %158, %163 : vector<8x200xf32>
    %165 = vector.broadcast %4 : vector<8x1xf32> to vector<8x200xf32>
    %166 = arith.addf %164, %165 : vector<8x200xf32>
    %167 = arith.addf %166, %0 : vector<8x200xf32>
    %168 = vector.broadcast %2 : vector<8x1xf32> to vector<8x200xf32>
    %169 = arith.mulf %167, %168 : vector<8x200xf32>
    %170 = vector.broadcast %3 : vector<8x1xf32> to vector<8x200xf32>
    %171 = arith.addf %169, %170 : vector<8x200xf32>
    %cst_10 = arith.constant 0.000000e+00 : f32
    %172 = vector.broadcast %cst_10 : f32 to vector<8x200xf32>
    %173 = arith.maximumf %171, %172 : vector<8x200xf32>
    %174 = vector.extract_strided_slice %9 {offsets = [0, 0], sizes = [8, 1], strides = [1, 1]} : vector<8x8xf32> to vector<8x1xf32>
    %175 = vector.extract_strided_slice %173 {offsets = [0, 0], sizes = [1, 200], strides = [1, 1]} : vector<8x200xf32> to vector<1x200xf32>
    %176 = vector.broadcast %174 : vector<8x1xf32> to vector<8x200xf32>
    %177 = vector.broadcast %175 : vector<1x200xf32> to vector<8x200xf32>
    %178 = arith.mulf %176, %177 : vector<8x200xf32>
    %179 = vector.extract_strided_slice %9 {offsets = [0, 1], sizes = [8, 1], strides = [1, 1]} : vector<8x8xf32> to vector<8x1xf32>
    %180 = vector.extract_strided_slice %173 {offsets = [1, 0], sizes = [1, 200], strides = [1, 1]} : vector<8x200xf32> to vector<1x200xf32>
    %181 = vector.broadcast %179 : vector<8x1xf32> to vector<8x200xf32>
    %182 = vector.broadcast %180 : vector<1x200xf32> to vector<8x200xf32>
    %183 = arith.mulf %181, %182 : vector<8x200xf32>
    %184 = arith.addf %178, %183 : vector<8x200xf32>
    %185 = vector.extract_strided_slice %9 {offsets = [0, 2], sizes = [8, 1], strides = [1, 1]} : vector<8x8xf32> to vector<8x1xf32>
    %186 = vector.extract_strided_slice %173 {offsets = [2, 0], sizes = [1, 200], strides = [1, 1]} : vector<8x200xf32> to vector<1x200xf32>
    %187 = vector.broadcast %185 : vector<8x1xf32> to vector<8x200xf32>
    %188 = vector.broadcast %186 : vector<1x200xf32> to vector<8x200xf32>
    %189 = arith.mulf %187, %188 : vector<8x200xf32>
    %190 = arith.addf %184, %189 : vector<8x200xf32>
    %191 = vector.extract_strided_slice %9 {offsets = [0, 3], sizes = [8, 1], strides = [1, 1]} : vector<8x8xf32> to vector<8x1xf32>
    %192 = vector.extract_strided_slice %173 {offsets = [3, 0], sizes = [1, 200], strides = [1, 1]} : vector<8x200xf32> to vector<1x200xf32>
    %193 = vector.broadcast %191 : vector<8x1xf32> to vector<8x200xf32>
    %194 = vector.broadcast %192 : vector<1x200xf32> to vector<8x200xf32>
    %195 = arith.mulf %193, %194 : vector<8x200xf32>
    %196 = arith.addf %190, %195 : vector<8x200xf32>
    %197 = vector.extract_strided_slice %9 {offsets = [0, 4], sizes = [8, 1], strides = [1, 1]} : vector<8x8xf32> to vector<8x1xf32>
    %198 = vector.extract_strided_slice %173 {offsets = [4, 0], sizes = [1, 200], strides = [1, 1]} : vector<8x200xf32> to vector<1x200xf32>
    %199 = vector.broadcast %197 : vector<8x1xf32> to vector<8x200xf32>
    %200 = vector.broadcast %198 : vector<1x200xf32> to vector<8x200xf32>
    %201 = arith.mulf %199, %200 : vector<8x200xf32>
    %202 = arith.addf %196, %201 : vector<8x200xf32>
    %203 = vector.extract_strided_slice %9 {offsets = [0, 5], sizes = [8, 1], strides = [1, 1]} : vector<8x8xf32> to vector<8x1xf32>
    %204 = vector.extract_strided_slice %173 {offsets = [5, 0], sizes = [1, 200], strides = [1, 1]} : vector<8x200xf32> to vector<1x200xf32>
    %205 = vector.broadcast %203 : vector<8x1xf32> to vector<8x200xf32>
    %206 = vector.broadcast %204 : vector<1x200xf32> to vector<8x200xf32>
    %207 = arith.mulf %205, %206 : vector<8x200xf32>
    %208 = arith.addf %202, %207 : vector<8x200xf32>
    %209 = vector.extract_strided_slice %9 {offsets = [0, 6], sizes = [8, 1], strides = [1, 1]} : vector<8x8xf32> to vector<8x1xf32>
    %210 = vector.extract_strided_slice %173 {offsets = [6, 0], sizes = [1, 200], strides = [1, 1]} : vector<8x200xf32> to vector<1x200xf32>
    %211 = vector.broadcast %209 : vector<8x1xf32> to vector<8x200xf32>
    %212 = vector.broadcast %210 : vector<1x200xf32> to vector<8x200xf32>
    %213 = arith.mulf %211, %212 : vector<8x200xf32>
    %214 = arith.addf %208, %213 : vector<8x200xf32>
    %215 = vector.extract_strided_slice %9 {offsets = [0, 7], sizes = [8, 1], strides = [1, 1]} : vector<8x8xf32> to vector<8x1xf32>
    %216 = vector.extract_strided_slice %173 {offsets = [7, 0], sizes = [1, 200], strides = [1, 1]} : vector<8x200xf32> to vector<1x200xf32>
    %217 = vector.broadcast %215 : vector<8x1xf32> to vector<8x200xf32>
    %218 = vector.broadcast %216 : vector<1x200xf32> to vector<8x200xf32>
    %219 = arith.mulf %217, %218 : vector<8x200xf32>
    %220 = arith.addf %214, %219 : vector<8x200xf32>
    %221 = vector.broadcast %5 : vector<8x1xf32> to vector<8x200xf32>
    %222 = arith.addf %220, %221 : vector<8x200xf32>
    %cst_11 = arith.constant 0.000000e+00 : f32
    %223 = vector.broadcast %cst_11 : f32 to vector<8x200xf32>
    %224 = arith.maximumf %222, %223 : vector<8x200xf32>
    %225 = vector.extract_strided_slice %9 {offsets = [0, 0], sizes = [8, 1], strides = [1, 1]} : vector<8x8xf32> to vector<8x1xf32>
    %226 = vector.extract_strided_slice %224 {offsets = [0, 0], sizes = [1, 200], strides = [1, 1]} : vector<8x200xf32> to vector<1x200xf32>
    %227 = vector.broadcast %225 : vector<8x1xf32> to vector<8x200xf32>
    %228 = vector.broadcast %226 : vector<1x200xf32> to vector<8x200xf32>
    %229 = arith.mulf %227, %228 : vector<8x200xf32>
    %230 = vector.extract_strided_slice %9 {offsets = [0, 1], sizes = [8, 1], strides = [1, 1]} : vector<8x8xf32> to vector<8x1xf32>
    %231 = vector.extract_strided_slice %224 {offsets = [1, 0], sizes = [1, 200], strides = [1, 1]} : vector<8x200xf32> to vector<1x200xf32>
    %232 = vector.broadcast %230 : vector<8x1xf32> to vector<8x200xf32>
    %233 = vector.broadcast %231 : vector<1x200xf32> to vector<8x200xf32>
    %234 = arith.mulf %232, %233 : vector<8x200xf32>
    %235 = arith.addf %229, %234 : vector<8x200xf32>
    %236 = vector.extract_strided_slice %9 {offsets = [0, 2], sizes = [8, 1], strides = [1, 1]} : vector<8x8xf32> to vector<8x1xf32>
    %237 = vector.extract_strided_slice %224 {offsets = [2, 0], sizes = [1, 200], strides = [1, 1]} : vector<8x200xf32> to vector<1x200xf32>
    %238 = vector.broadcast %236 : vector<8x1xf32> to vector<8x200xf32>
    %239 = vector.broadcast %237 : vector<1x200xf32> to vector<8x200xf32>
    %240 = arith.mulf %238, %239 : vector<8x200xf32>
    %241 = arith.addf %235, %240 : vector<8x200xf32>
    %242 = vector.extract_strided_slice %9 {offsets = [0, 3], sizes = [8, 1], strides = [1, 1]} : vector<8x8xf32> to vector<8x1xf32>
    %243 = vector.extract_strided_slice %224 {offsets = [3, 0], sizes = [1, 200], strides = [1, 1]} : vector<8x200xf32> to vector<1x200xf32>
    %244 = vector.broadcast %242 : vector<8x1xf32> to vector<8x200xf32>
    %245 = vector.broadcast %243 : vector<1x200xf32> to vector<8x200xf32>
    %246 = arith.mulf %244, %245 : vector<8x200xf32>
    %247 = arith.addf %241, %246 : vector<8x200xf32>
    %248 = vector.extract_strided_slice %9 {offsets = [0, 4], sizes = [8, 1], strides = [1, 1]} : vector<8x8xf32> to vector<8x1xf32>
    %249 = vector.extract_strided_slice %224 {offsets = [4, 0], sizes = [1, 200], strides = [1, 1]} : vector<8x200xf32> to vector<1x200xf32>
    %250 = vector.broadcast %248 : vector<8x1xf32> to vector<8x200xf32>
    %251 = vector.broadcast %249 : vector<1x200xf32> to vector<8x200xf32>
    %252 = arith.mulf %250, %251 : vector<8x200xf32>
    %253 = arith.addf %247, %252 : vector<8x200xf32>
    %254 = vector.extract_strided_slice %9 {offsets = [0, 5], sizes = [8, 1], strides = [1, 1]} : vector<8x8xf32> to vector<8x1xf32>
    %255 = vector.extract_strided_slice %224 {offsets = [5, 0], sizes = [1, 200], strides = [1, 1]} : vector<8x200xf32> to vector<1x200xf32>
    %256 = vector.broadcast %254 : vector<8x1xf32> to vector<8x200xf32>
    %257 = vector.broadcast %255 : vector<1x200xf32> to vector<8x200xf32>
    %258 = arith.mulf %256, %257 : vector<8x200xf32>
    %259 = arith.addf %253, %258 : vector<8x200xf32>
    %260 = vector.extract_strided_slice %9 {offsets = [0, 6], sizes = [8, 1], strides = [1, 1]} : vector<8x8xf32> to vector<8x1xf32>
    %261 = vector.extract_strided_slice %224 {offsets = [6, 0], sizes = [1, 200], strides = [1, 1]} : vector<8x200xf32> to vector<1x200xf32>
    %262 = vector.broadcast %260 : vector<8x1xf32> to vector<8x200xf32>
    %263 = vector.broadcast %261 : vector<1x200xf32> to vector<8x200xf32>
    %264 = arith.mulf %262, %263 : vector<8x200xf32>
    %265 = arith.addf %259, %264 : vector<8x200xf32>
    %266 = vector.extract_strided_slice %9 {offsets = [0, 7], sizes = [8, 1], strides = [1, 1]} : vector<8x8xf32> to vector<8x1xf32>
    %267 = vector.extract_strided_slice %224 {offsets = [7, 0], sizes = [1, 200], strides = [1, 1]} : vector<8x200xf32> to vector<1x200xf32>
    %268 = vector.broadcast %266 : vector<8x1xf32> to vector<8x200xf32>
    %269 = vector.broadcast %267 : vector<1x200xf32> to vector<8x200xf32>
    %270 = arith.mulf %268, %269 : vector<8x200xf32>
    %271 = arith.addf %265, %270 : vector<8x200xf32>
    %272 = vector.broadcast %5 : vector<8x1xf32> to vector<8x200xf32>
    %273 = arith.addf %271, %272 : vector<8x200xf32>
    %cst_12 = arith.constant 0.000000e+00 : f32
    %274 = vector.broadcast %cst_12 : f32 to vector<8x200xf32>
    %275 = arith.maximumf %273, %274 : vector<8x200xf32>
    %276 = vector.extract_strided_slice %7 {offsets = [0, 0], sizes = [8, 1], strides = [1, 1]} : vector<8x8xf32> to vector<8x1xf32>
    %277 = vector.extract_strided_slice %275 {offsets = [0, 0], sizes = [1, 200], strides = [1, 1]} : vector<8x200xf32> to vector<1x200xf32>
    %278 = vector.broadcast %276 : vector<8x1xf32> to vector<8x200xf32>
    %279 = vector.broadcast %277 : vector<1x200xf32> to vector<8x200xf32>
    %280 = arith.mulf %278, %279 : vector<8x200xf32>
    %281 = vector.extract_strided_slice %7 {offsets = [0, 1], sizes = [8, 1], strides = [1, 1]} : vector<8x8xf32> to vector<8x1xf32>
    %282 = vector.extract_strided_slice %275 {offsets = [1, 0], sizes = [1, 200], strides = [1, 1]} : vector<8x200xf32> to vector<1x200xf32>
    %283 = vector.broadcast %281 : vector<8x1xf32> to vector<8x200xf32>
    %284 = vector.broadcast %282 : vector<1x200xf32> to vector<8x200xf32>
    %285 = arith.mulf %283, %284 : vector<8x200xf32>
    %286 = arith.addf %280, %285 : vector<8x200xf32>
    %287 = vector.extract_strided_slice %7 {offsets = [0, 2], sizes = [8, 1], strides = [1, 1]} : vector<8x8xf32> to vector<8x1xf32>
    %288 = vector.extract_strided_slice %275 {offsets = [2, 0], sizes = [1, 200], strides = [1, 1]} : vector<8x200xf32> to vector<1x200xf32>
    %289 = vector.broadcast %287 : vector<8x1xf32> to vector<8x200xf32>
    %290 = vector.broadcast %288 : vector<1x200xf32> to vector<8x200xf32>
    %291 = arith.mulf %289, %290 : vector<8x200xf32>
    %292 = arith.addf %286, %291 : vector<8x200xf32>
    %293 = vector.extract_strided_slice %7 {offsets = [0, 3], sizes = [8, 1], strides = [1, 1]} : vector<8x8xf32> to vector<8x1xf32>
    %294 = vector.extract_strided_slice %275 {offsets = [3, 0], sizes = [1, 200], strides = [1, 1]} : vector<8x200xf32> to vector<1x200xf32>
    %295 = vector.broadcast %293 : vector<8x1xf32> to vector<8x200xf32>
    %296 = vector.broadcast %294 : vector<1x200xf32> to vector<8x200xf32>
    %297 = arith.mulf %295, %296 : vector<8x200xf32>
    %298 = arith.addf %292, %297 : vector<8x200xf32>
    %299 = vector.extract_strided_slice %7 {offsets = [0, 4], sizes = [8, 1], strides = [1, 1]} : vector<8x8xf32> to vector<8x1xf32>
    %300 = vector.extract_strided_slice %275 {offsets = [4, 0], sizes = [1, 200], strides = [1, 1]} : vector<8x200xf32> to vector<1x200xf32>
    %301 = vector.broadcast %299 : vector<8x1xf32> to vector<8x200xf32>
    %302 = vector.broadcast %300 : vector<1x200xf32> to vector<8x200xf32>
    %303 = arith.mulf %301, %302 : vector<8x200xf32>
    %304 = arith.addf %298, %303 : vector<8x200xf32>
    %305 = vector.extract_strided_slice %7 {offsets = [0, 5], sizes = [8, 1], strides = [1, 1]} : vector<8x8xf32> to vector<8x1xf32>
    %306 = vector.extract_strided_slice %275 {offsets = [5, 0], sizes = [1, 200], strides = [1, 1]} : vector<8x200xf32> to vector<1x200xf32>
    %307 = vector.broadcast %305 : vector<8x1xf32> to vector<8x200xf32>
    %308 = vector.broadcast %306 : vector<1x200xf32> to vector<8x200xf32>
    %309 = arith.mulf %307, %308 : vector<8x200xf32>
    %310 = arith.addf %304, %309 : vector<8x200xf32>
    %311 = vector.extract_strided_slice %7 {offsets = [0, 6], sizes = [8, 1], strides = [1, 1]} : vector<8x8xf32> to vector<8x1xf32>
    %312 = vector.extract_strided_slice %275 {offsets = [6, 0], sizes = [1, 200], strides = [1, 1]} : vector<8x200xf32> to vector<1x200xf32>
    %313 = vector.broadcast %311 : vector<8x1xf32> to vector<8x200xf32>
    %314 = vector.broadcast %312 : vector<1x200xf32> to vector<8x200xf32>
    %315 = arith.mulf %313, %314 : vector<8x200xf32>
    %316 = arith.addf %310, %315 : vector<8x200xf32>
    %317 = vector.extract_strided_slice %7 {offsets = [0, 7], sizes = [8, 1], strides = [1, 1]} : vector<8x8xf32> to vector<8x1xf32>
    %318 = vector.extract_strided_slice %275 {offsets = [7, 0], sizes = [1, 200], strides = [1, 1]} : vector<8x200xf32> to vector<1x200xf32>
    %319 = vector.broadcast %317 : vector<8x1xf32> to vector<8x200xf32>
    %320 = vector.broadcast %318 : vector<1x200xf32> to vector<8x200xf32>
    %321 = arith.mulf %319, %320 : vector<8x200xf32>
    %322 = arith.addf %316, %321 : vector<8x200xf32>
    %323 = vector.broadcast %4 : vector<8x1xf32> to vector<8x200xf32>
    %324 = arith.addf %322, %323 : vector<8x200xf32>
    %325 = arith.addf %324, %167 : vector<8x200xf32>
    %c0_13 = arith.constant 0 : index
    %c0_14 = arith.constant 0 : index
    %326 = vector.load %arg4[%c0_13, %c0_14] : memref<8x200xf32, #tpu.memory_space<vmem>>, vector<8x200xf32>
    tpu.vector_store %arg4[%c0_13, %c0_14], %325 {strides = array<i32>} : memref<8x200xf32, #tpu.memory_space<vmem>>, vector<8x200xf32>,
    return
  }
  func.func @transform_0(%arg0: i32) -> (i32, i32) {
    %c0_i32 = arith.constant 0 : i32
    %c0_i32_0 = arith.constant 0 : i32
    return %c0_i32, %arg0 : i32, i32
  }
  func.func @transform_1(%arg0: i32) -> (i32, i32) {
    %c0_i32 = arith.constant 0 : i32
    %c0_i32_0 = arith.constant 0 : i32
    %c0_i32_1 = arith.constant 0 : i32
    return %c0_i32, %c0_i32_0 : i32, i32
  }
  func.func @transform_2(%arg0: i32) -> (i32, i32, i32) {
    %c0_i32 = arith.constant 0 : i32
    %c0_i32_0 = arith.constant 0 : i32
    %c0_i32_1 = arith.constant 0 : i32
    %c0_i32_2 = arith.constant 0 : i32
    return %c0_i32, %c0_i32_0, %c0_i32_1 : i32, i32, i32
  }
  func.func @transform_3(%arg0: i32) -> (i32, i32) {
    %c0_i32 = arith.constant 0 : i32
    %c0_i32_0 = arith.constant 0 : i32
    return %c0_i32, %arg0 : i32, i32
  }
}

</mosaic_0001>

<llo_original>
// kernel: maskbranch19_30_forward.1
$region0: #{maskbranch19_30_forward.1}
  #allocation0 [shape = 'u32[]', space=smem, size = 0x4, offset = 0x4, fixed_abs, tag = 'smem constant byte address 0x4 - core index']
  #allocation1 [shape = 'u32[144,128]{1,0:T(1,128)}', space=vmem, size = 0x12000, scoped, tag = 'internal scratch']
  %s0 = inlined_call_operand.vmem [shape: f32[8,200], index: 0, kind: input, shape index: {}]
  %s1 = inlined_call_operand.vmem [shape: f32[8,4], index: 1, kind: input, shape index: {}]
  %s2 = inlined_call_operand.vmem [shape: f32[2,8,8], index: 2, kind: input, shape index: {}]
  %s3 = inlined_call_operand.vmem [shape: f32[8,200], index: 3, kind: output, shape index: {}]
  %s4 = sld [smem:[#allocation0]]
  $region22: #{maskbranch19_30_forward.1} parent=0
    _
  %s6 = ssub.s32 1, %s4
  %s7 = scalar_select 0, %s6, %s4
  // Predicated region
  $region2: #{maskbranch19_30_forward.1} parent=0 // pred_check
    _
  $region3: #{maskbranch19_30_forward.1} parent=0 // pred_check_branch
    %9 = sbr.rel (0) target = $region5
  $region4: #{maskbranch19_30_forward.1} parent=0 // pred_region
    _
  $region5: #{maskbranch19_30_forward.1} parent=0 // pred_fallthru
    _
  // Predicated region
  $region6: #{maskbranch19_30_forward.1} parent=0 // pred_check
    _
  $region7: #{maskbranch19_30_forward.1} parent=0 // pred_check_branch
    %11 = sbr.rel (0) target = $region9
  $region8: #{maskbranch19_30_forward.1} parent=0 // pred_region
    _
  $region9: #{maskbranch19_30_forward.1} parent=0 // pred_fallthru
    _
  // Predicated region
  $region10: #{maskbranch19_30_forward.1} parent=0 // pred_check
    _
  $region11: #{maskbranch19_30_forward.1} parent=0 // pred_check_branch
    %13 = sbr.rel (0) target = $region13
  $region12: #{maskbranch19_30_forward.1} parent=0 // pred_region
    _
  $region13: #{maskbranch19_30_forward.1} parent=0 // pred_fallthru
    _
  %v14 = vld [vmem:[%s0] sm:$0xff]
  %v15 = vld [vmem:[%s0 + $0x8] sm:$0xff]
  %v16 = vld [vmem:[%s1] sm:$0xff]
  %v17 = vld [vmem:[%s2] sm:$0xff]
  %s18 = scalar_lea.vmem %s2, 8
  %v19 = vld [vmem:[%s18] sm:$0xff]
  %21 = vset.pattern.permute.xlu0 0
  %22 = vperm.xlu0 %21, %v16
  %v23 = vpop.permute.xlu0 %22
  %v25 = vmul.f32 %v14, %v23
  %v26 = vmul.f32 %v15, %v23
  %27 = vset.pattern.permute.xlu0 1
  %28 = vperm.xlu0 %27, %v16
  %v29 = vpop.permute.xlu0 %28
  %v31 = vadd.f32 %v25, %v29
  %v32 = vadd.f32 %v26, %v29
  %v33 = vmax.f32 %v31, 0.0
  %v34 = vmax.f32 %v32, 0.0
  %36 = vset.pattern.permute.xlu0 0
  %37 = vperm.xlu0 %36, %v19
  %v38 = vpop.permute.xlu0 %37
  %v40 = vlaneseq
  %v41 = vshrl.u32 %v40, 7
  %v42 = vsub.s32 0, %v41
  %v43 = vrot.slane %v33, %v42
  %v44 = vlaneseq
  %v45 = vshrl.u32 %v44, 7
  %v46 = vsub.s32 0, %v45
  %v47 = vrot.slane %v34, %v46
  %v48 = vmul.f32 %v38, %v43
  %v49 = vmul.f32 %v38, %v47
  %50 = vset.pattern.permute.xlu0 1
  %51 = vperm.xlu0 %50, %v19
  %v52 = vpop.permute.xlu0 %51
  %v54 = vlaneseq
  %v55 = vshrl.u32 %v54, 7
  %v56 = vsub.s32 1, %v55
  %v57 = vrot.slane %v33, %v56
  %v58 = vlaneseq
  %v59 = vshrl.u32 %v58, 7
  %v60 = vsub.s32 1, %v59
  %v61 = vrot.slane %v34, %v60
  %v62 = vmul.f32 %v52, %v57
  %v63 = vmul.f32 %v52, %v61
  %v64 = vadd.f32 %v48, %v62
  %v65 = vadd.f32 %v49, %v63
  %66 = vset.pattern.permute.xlu0 2
  %67 = vperm.xlu0 %66, %v19
  %v68 = vpop.permute.xlu0 %67
  %v70 = vlaneseq
  %v71 = vshrl.u32 %v70, 7
  %v72 = vsub.s32 2, %v71
  %v73 = vrot.slane %v33, %v72
  %v74 = vlaneseq
  %v75 = vshrl.u32 %v74, 7
  %v76 = vsub.s32 2, %v75
  %v77 = vrot.slane %v34, %v76
  %v78 = vmul.f32 %v68, %v73
  %v79 = vmul.f32 %v68, %v77
  %v80 = vadd.f32 %v64, %v78
  %v81 = vadd.f32 %v65, %v79
  %82 = vset.pattern.permute.xlu0 3
  %83 = vperm.xlu0 %82, %v19
  %v84 = vpop.permute.xlu0 %83
  %v86 = vlaneseq
  %v87 = vshrl.u32 %v86, 7
  %v88 = vsub.s32 3, %v87
  %v89 = vrot.slane %v33, %v88
  %v90 = vlaneseq
  %v91 = vshrl.u32 %v90, 7
  %v92 = vsub.s32 3, %v91
  %v93 = vrot.slane %v34, %v92
  %v94 = vmul.f32 %v84, %v89
  %v95 = vmul.f32 %v84, %v93
  %v96 = vadd.f32 %v80, %v94
  %v97 = vadd.f32 %v81, %v95
  %98 = vset.pattern.permute.xlu0 4
  %99 = vperm.xlu0 %98, %v19
  %v100 = vpop.permute.xlu0 %99
  %v102 = vlaneseq
  %v103 = vshrl.u32 %v102, 7
  %v104 = vsub.s32 4, %v103
  %v105 = vrot.slane %v33, %v104
  %v106 = vlaneseq
  %v107 = vshrl.u32 %v106, 7
  %v108 = vsub.s32 4, %v107
  %v109 = vrot.slane %v34, %v108
  %v110 = vmul.f32 %v100, %v105
  %v111 = vmul.f32 %v100, %v109
  %v112 = vadd.f32 %v96, %v110
  %v113 = vadd.f32 %v97, %v111
  %114 = vset.pattern.permute.xlu0 5
  %115 = vperm.xlu0 %114, %v19
  %v116 = vpop.permute.xlu0 %115
  %v118 = vlaneseq
  %v119 = vshrl.u32 %v118, 7
  %v120 = vsub.s32 5, %v119
  %v121 = vrot.slane %v33, %v120
  %v122 = vlaneseq
  %v123 = vshrl.u32 %v122, 7
  %v124 = vsub.s32 5, %v123
  %v125 = vrot.slane %v34, %v124
  %v126 = vmul.f32 %v116, %v121
  %v127 = vmul.f32 %v116, %v125
  %v128 = vadd.f32 %v112, %v126
  %v129 = vadd.f32 %v113, %v127
  %130 = vset.pattern.permute.xlu0 6
  %131 = vperm.xlu0 %130, %v19
  %v132 = vpop.permute.xlu0 %131
  %v134 = vlaneseq
  %v135 = vshrl.u32 %v134, 7
  %v136 = vsub.s32 6, %v135
  %v137 = vrot.slane %v33, %v136
  %v138 = vlaneseq
  %v139 = vshrl.u32 %v138, 7
  %v140 = vsub.s32 6, %v139
  %v141 = vrot.slane %v34, %v140
  %v142 = vmul.f32 %v132, %v137
  %v143 = vmul.f32 %v132, %v141
  %v144 = vadd.f32 %v128, %v142
  %v145 = vadd.f32 %v129, %v143
  %146 = vset.pattern.permute.xlu0 7
  %147 = vperm.xlu0 %146, %v19
  %v148 = vpop.permute.xlu0 %147
  %v150 = vlaneseq
  %v151 = vshrl.u32 %v150, 7
  %v152 = vsub.s32 7, %v151
  %v153 = vrot.slane %v33, %v152
  %v154 = vlaneseq
  %v155 = vshrl.u32 %v154, 7
  %v156 = vsub.s32 7, %v155
  %v157 = vrot.slane %v34, %v156
  %v158 = vmul.f32 %v148, %v153
  %v159 = vmul.f32 %v148, %v157
  %v160 = vadd.f32 %v144, %v158
  %v161 = vadd.f32 %v145, %v159
  %162 = vset.pattern.permute.xlu0 3
  %163 = vperm.xlu0 %162, %v16
  %v164 = vpop.permute.xlu0 %163
  %v166 = vadd.f32 %v160, %v164
  %v167 = vadd.f32 %v161, %v164
  %v168 = vmax.f32 %v166, 0.0
  %v169 = vmax.f32 %v167, 0.0
  %v170 = vlaneseq
  %v171 = vshrl.u32 %v170, 7
  %v172 = vsub.s32 0, %v171
  %v173 = vrot.slane %v168, %v172
  %v174 = vlaneseq
  %v175 = vshrl.u32 %v174, 7
  %v176 = vsub.s32 0, %v175
  %v177 = vrot.slane %v169, %v176
  %v178 = vmul.f32 %v38, %v173
  %v179 = vmul.f32 %v38, %v177
  %v180 = vlaneseq
  %v181 = vshrl.u32 %v180, 7
  %v182 = vsub.s32 1, %v181
  %v183 = vrot.slane %v168, %v182
  %v184 = vlaneseq
  %v185 = vshrl.u32 %v184, 7
  %v186 = vsub.s32 1, %v185
  %v187 = vrot.slane %v169, %v186
  %v188 = vmul.f32 %v52, %v183
  %v189 = vmul.f32 %v52, %v187
  %v190 = vadd.f32 %v178, %v188
  %v191 = vadd.f32 %v179, %v189
  %v192 = vlaneseq
  %v193 = vshrl.u32 %v192, 7
  %v194 = vsub.s32 2, %v193
  %v195 = vrot.slane %v168, %v194
  %v196 = vlaneseq
  %v197 = vshrl.u32 %v196, 7
  %v198 = vsub.s32 2, %v197
  %v199 = vrot.slane %v169, %v198
  %v200 = vmul.f32 %v68, %v195
  %v201 = vmul.f32 %v68, %v199
  %v202 = vadd.f32 %v190, %v200
  %v203 = vadd.f32 %v191, %v201
  %v204 = vlaneseq
  %v205 = vshrl.u32 %v204, 7
  %v206 = vsub.s32 3, %v205
  %v207 = vrot.slane %v168, %v206
  %v208 = vlaneseq
  %v209 = vshrl.u32 %v208, 7
  %v210 = vsub.s32 3, %v209
  %v211 = vrot.slane %v169, %v210
  %v212 = vmul.f32 %v84, %v207
  %v213 = vmul.f32 %v84, %v211
  %v214 = vadd.f32 %v202, %v212
  %v215 = vadd.f32 %v203, %v213
  %v216 = vlaneseq
  %v217 = vshrl.u32 %v216, 7
  %v218 = vsub.s32 4, %v217
  %v219 = vrot.slane %v168, %v218
  %v220 = vlaneseq
  %v221 = vshrl.u32 %v220, 7
  %v222 = vsub.s32 4, %v221
  %v223 = vrot.slane %v169, %v222
  %v224 = vmul.f32 %v100, %v219
  %v225 = vmul.f32 %v100, %v223
  %v226 = vadd.f32 %v214, %v224
  %v227 = vadd.f32 %v215, %v225
  %v228 = vlaneseq
  %v229 = vshrl.u32 %v228, 7
  %v230 = vsub.s32 5, %v229
  %v231 = vrot.slane %v168, %v230
  %v232 = vlaneseq
  %v233 = vshrl.u32 %v232, 7
  %v234 = vsub.s32 5, %v233
  %v235 = vrot.slane %v169, %v234
  %v236 = vmul.f32 %v116, %v231
  %v237 = vmul.f32 %v116, %v235
  %v238 = vadd.f32 %v226, %v236
  %v239 = vadd.f32 %v227, %v237
  %v240 = vlaneseq
  %v241 = vshrl.u32 %v240, 7
  %v242 = vsub.s32 6, %v241
  %v243 = vrot.slane %v168, %v242
  %v244 = vlaneseq
  %v245 = vshrl.u32 %v244, 7
  %v246 = vsub.s32 6, %v245
  %v247 = vrot.slane %v169, %v246
  %v248 = vmul.f32 %v132, %v243
  %v249 = vmul.f32 %v132, %v247
  %v250 = vadd.f32 %v238, %v248
  %v251 = vadd.f32 %v239, %v249
  %v252 = vlaneseq
  %v253 = vshrl.u32 %v252, 7
  %v254 = vsub.s32 7, %v253
  %v255 = vrot.slane %v168, %v254
  %v256 = vlaneseq
  %v257 = vshrl.u32 %v256, 7
  %v258 = vsub.s32 7, %v257
  %v259 = vrot.slane %v169, %v258
  %v260 = vmul.f32 %v148, %v255
  %v261 = vmul.f32 %v148, %v259
  %v262 = vadd.f32 %v250, %v260
  %v263 = vadd.f32 %v251, %v261
  %v264 = vadd.f32 %v262, %v164
  %v265 = vadd.f32 %v263, %v164
  %v266 = vmax.f32 %v264, 0.0
  %v267 = vmax.f32 %v265, 0.0
  %269 = vset.pattern.permute.xlu0 0
  %270 = vperm.xlu0 %269, %v17
  %v271 = vpop.permute.xlu0 %270
  %v273 = vlaneseq
  %v274 = vshrl.u32 %v273, 7
  %v275 = vsub.s32 0, %v274
  %v276 = vrot.slane %v266, %v275
  %v277 = vlaneseq
  %v278 = vshrl.u32 %v277, 7
  %v279 = vsub.s32 0, %v278
  %v280 = vrot.slane %v267, %v279
  %v281 = vmul.f32 %v271, %v276
  %v282 = vmul.f32 %v271, %v280
  %283 = vset.pattern.permute.xlu0 1
  %284 = vperm.xlu0 %283, %v17
  %v285 = vpop.permute.xlu0 %284
  %v287 = vlaneseq
  %v288 = vshrl.u32 %v287, 7
  %v289 = vsub.s32 1, %v288
  %v290 = vrot.slane %v266, %v289
  %v291 = vlaneseq
  %v292 = vshrl.u32 %v291, 7
  %v293 = vsub.s32 1, %v292
  %v294 = vrot.slane %v267, %v293
  %v295 = vmul.f32 %v285, %v290
  %v296 = vmul.f32 %v285, %v294
  %v297 = vadd.f32 %v281, %v295
  %v298 = vadd.f32 %v282, %v296
  %299 = vset.pattern.permute.xlu0 2
  %300 = vperm.xlu0 %299, %v17
  %v301 = vpop.permute.xlu0 %300
  %v303 = vlaneseq
  %v304 = vshrl.u32 %v303, 7
  %v305 = vsub.s32 2, %v304
  %v306 = vrot.slane %v266, %v305
  %v307 = vlaneseq
  %v308 = vshrl.u32 %v307, 7
  %v309 = vsub.s32 2, %v308
  %v310 = vrot.slane %v267, %v309
  %v311 = vmul.f32 %v301, %v306
  %v312 = vmul.f32 %v301, %v310
  %v313 = vadd.f32 %v297, %v311
  %v314 = vadd.f32 %v298, %v312
  %315 = vset.pattern.permute.xlu0 3
  %316 = vperm.xlu0 %315, %v17
  %v317 = vpop.permute.xlu0 %316
  %v319 = vlaneseq
  %v320 = vshrl.u32 %v319, 7
  %v321 = vsub.s32 3, %v320
  %v322 = vrot.slane %v266, %v321
  %v323 = vlaneseq
  %v324 = vshrl.u32 %v323, 7
  %v325 = vsub.s32 3, %v324
  %v326 = vrot.slane %v267, %v325
  %v327 = vmul.f32 %v317, %v322
  %v328 = vmul.f32 %v317, %v326
  %v329 = vadd.f32 %v313, %v327
  %v330 = vadd.f32 %v314, %v328
  %331 = vset.pattern.permute.xlu0 4
  %332 = vperm.xlu0 %331, %v17
  %v333 = vpop.permute.xlu0 %332
  %v335 = vlaneseq
  %v336 = vshrl.u32 %v335, 7
  %v337 = vsub.s32 4, %v336
  %v338 = vrot.slane %v266, %v337
  %v339 = vlaneseq
  %v340 = vshrl.u32 %v339, 7
  %v341 = vsub.s32 4, %v340
  %v342 = vrot.slane %v267, %v341
  %v343 = vmul.f32 %v333, %v338
  %v344 = vmul.f32 %v333, %v342
  %v345 = vadd.f32 %v329, %v343
  %v346 = vadd.f32 %v330, %v344
  %347 = vset.pattern.permute.xlu0 5
  %348 = vperm.xlu0 %347, %v17
  %v349 = vpop.permute.xlu0 %348
  %v351 = vlaneseq
  %v352 = vshrl.u32 %v351, 7
  %v353 = vsub.s32 5, %v352
  %v354 = vrot.slane %v266, %v353
  %v355 = vlaneseq
  %v356 = vshrl.u32 %v355, 7
  %v357 = vsub.s32 5, %v356
  %v358 = vrot.slane %v267, %v357
  %v359 = vmul.f32 %v349, %v354
  %v360 = vmul.f32 %v349, %v358
  %v361 = vadd.f32 %v345, %v359
  %v362 = vadd.f32 %v346, %v360
  %363 = vset.pattern.permute.xlu0 6
  %364 = vperm.xlu0 %363, %v17
  %v365 = vpop.permute.xlu0 %364
  %v367 = vlaneseq
  %v368 = vshrl.u32 %v367, 7
  %v369 = vsub.s32 6, %v368
  %v370 = vrot.slane %v266, %v369
  %v371 = vlaneseq
  %v372 = vshrl.u32 %v371, 7
  %v373 = vsub.s32 6, %v372
  %v374 = vrot.slane %v267, %v373
  %v375 = vmul.f32 %v365, %v370
  %v376 = vmul.f32 %v365, %v374
  %v377 = vadd.f32 %v361, %v375
  %v378 = vadd.f32 %v362, %v376
  %379 = vset.pattern.permute.xlu0 7
  %380 = vperm.xlu0 %379, %v17
  %v381 = vpop.permute.xlu0 %380
  %v383 = vlaneseq
  %v384 = vshrl.u32 %v383, 7
  %v385 = vsub.s32 7, %v384
  %v386 = vrot.slane %v266, %v385
  %v387 = vlaneseq
  %v388 = vshrl.u32 %v387, 7
  %v389 = vsub.s32 7, %v388
  %v390 = vrot.slane %v267, %v389
  %v391 = vmul.f32 %v381, %v386
  %v392 = vmul.f32 %v381, %v390
  %v393 = vadd.f32 %v377, %v391
  %v394 = vadd.f32 %v378, %v392
  %395 = vset.pattern.permute.xlu0 2
  %396 = vperm.xlu0 %395, %v16
  %v397 = vpop.permute.xlu0 %396
  %v399 = vadd.f32 %v393, %v397
  %v400 = vadd.f32 %v394, %v397
  %v401 = vadd.f32 %v399, %v14
  %v402 = vadd.f32 %v400, %v15
  %v403 = vmul.f32 %v401, %v23
  %v404 = vmul.f32 %v402, %v23
  %v405 = vadd.f32 %v403, %v29
  %v406 = vadd.f32 %v404, %v29
  %v407 = vmax.f32 %v405, 0.0
  %v408 = vmax.f32 %v406, 0.0
  %v409 = vlaneseq
  %v410 = vshrl.u32 %v409, 7
  %v411 = vsub.s32 0, %v410
  %v412 = vrot.slane %v407, %v411
  %v413 = vlaneseq
  %v414 = vshrl.u32 %v413, 7
  %v415 = vsub.s32 0, %v414
  %v416 = vrot.slane %v408, %v415
  %v417 = vmul.f32 %v38, %v412
  %v418 = vmul.f32 %v38, %v416
  %v419 = vlaneseq
  %v420 = vshrl.u32 %v419, 7
  %v421 = vsub.s32 1, %v420
  %v422 = vrot.slane %v407, %v421
  %v423 = vlaneseq
  %v424 = vshrl.u32 %v423, 7
  %v425 = vsub.s32 1, %v424
  %v426 = vrot.slane %v408, %v425
  %v427 = vmul.f32 %v52, %v422
  %v428 = vmul.f32 %v52, %v426
  %v429 = vadd.f32 %v417, %v427
  %v430 = vadd.f32 %v418, %v428
  %v431 = vlaneseq
  %v432 = vshrl.u32 %v431, 7
  %v433 = vsub.s32 2, %v432
  %v434 = vrot.slane %v407, %v433
  %v435 = vlaneseq
  %v436 = vshrl.u32 %v435, 7
  %v437 = vsub.s32 2, %v436
  %v438 = vrot.slane %v408, %v437
  %v439 = vmul.f32 %v68, %v434
  %v440 = vmul.f32 %v68, %v438
  %v441 = vadd.f32 %v429, %v439
  %v442 = vadd.f32 %v430, %v440
  %v443 = vlaneseq
  %v444 = vshrl.u32 %v443, 7
  %v445 = vsub.s32 3, %v444
  %v446 = vrot.slane %v407, %v445
  %v447 = vlaneseq
  %v448 = vshrl.u32 %v447, 7
  %v449 = vsub.s32 3, %v448
  %v450 = vrot.slane %v408, %v449
  %v451 = vmul.f32 %v84, %v446
  %v452 = vmul.f32 %v84, %v450
  %v453 = vadd.f32 %v441, %v451
  %v454 = vadd.f32 %v442, %v452
  %v455 = vlaneseq
  %v456 = vshrl.u32 %v455, 7
  %v457 = vsub.s32 4, %v456
  %v458 = vrot.slane %v407, %v457
  %v459 = vlaneseq
  %v460 = vshrl.u32 %v459, 7
  %v461 = vsub.s32 4, %v460
  %v462 = vrot.slane %v408, %v461
  %v463 = vmul.f32 %v100, %v458
  %v464 = vmul.f32 %v100, %v462
  %v465 = vadd.f32 %v453, %v463
  %v466 = vadd.f32 %v454, %v464
  %v467 = vlaneseq
  %v468 = vshrl.u32 %v467, 7
  %v469 = vsub.s32 5, %v468
  %v470 = vrot.slane %v407, %v469
  %v471 = vlaneseq
  %v472 = vshrl.u32 %v471, 7
  %v473 = vsub.s32 5, %v472
  %v474 = vrot.slane %v408, %v473
  %v475 = vmul.f32 %v116, %v470
  %v476 = vmul.f32 %v116, %v474
  %v477 = vadd.f32 %v465, %v475
  %v478 = vadd.f32 %v466, %v476
  %v479 = vlaneseq
  %v480 = vshrl.u32 %v479, 7
  %v481 = vsub.s32 6, %v480
  %v482 = vrot.slane %v407, %v481
  %v483 = vlaneseq
  %v484 = vshrl.u32 %v483, 7
  %v485 = vsub.s32 6, %v484
  %v486 = vrot.slane %v408, %v485
  %v487 = vmul.f32 %v132, %v482
  %v488 = vmul.f32 %v132, %v486
  %v489 = vadd.f32 %v477, %v487
  %v490 = vadd.f32 %v478, %v488
  %v491 = vlaneseq
  %v492 = vshrl.u32 %v491, 7
  %v493 = vsub.s32 7, %v492
  %v494 = vrot.slane %v407, %v493
  %v495 = vlaneseq
  %v496 = vshrl.u32 %v495, 7
  %v497 = vsub.s32 7, %v496
  %v498 = vrot.slane %v408, %v497
  %v499 = vmul.f32 %v148, %v494
  %v500 = vmul.f32 %v148, %v498
  %v501 = vadd.f32 %v489, %v499
  %v502 = vadd.f32 %v490, %v500
  %v503 = vadd.f32 %v501, %v164
  %v504 = vadd.f32 %v502, %v164
  %v505 = vmax.f32 %v503, 0.0
  %v506 = vmax.f32 %v504, 0.0
  %v507 = vlaneseq
  %v508 = vshrl.u32 %v507, 7
  %v509 = vsub.s32 0, %v508
  %v510 = vrot.slane %v505, %v509
  %v511 = vlaneseq
  %v512 = vshrl.u32 %v511, 7
  %v513 = vsub.s32 0, %v512
  %v514 = vrot.slane %v506, %v513
  %v515 = vmul.f32 %v38, %v510
  %v516 = vmul.f32 %v38, %v514
  %v517 = vlaneseq
  %v518 = vshrl.u32 %v517, 7
  %v519 = vsub.s32 1, %v518
  %v520 = vrot.slane %v505, %v519
  %v521 = vlaneseq
  %v522 = vshrl.u32 %v521, 7
  %v523 = vsub.s32 1, %v522
  %v524 = vrot.slane %v506, %v523
  %v525 = vmul.f32 %v52, %v520
  %v526 = vmul.f32 %v52, %v524
  %v527 = vadd.f32 %v515, %v525
  %v528 = vadd.f32 %v516, %v526
  %v529 = vlaneseq
  %v530 = vshrl.u32 %v529, 7
  %v531 = vsub.s32 2, %v530
  %v532 = vrot.slane %v505, %v531
  %v533 = vlaneseq
  %v534 = vshrl.u32 %v533, 7
  %v535 = vsub.s32 2, %v534
  %v536 = vrot.slane %v506, %v535
  %v537 = vmul.f32 %v68, %v532
  %v538 = vmul.f32 %v68, %v536
  %v539 = vadd.f32 %v527, %v537
  %v540 = vadd.f32 %v528, %v538
  %v541 = vlaneseq
  %v542 = vshrl.u32 %v541, 7
  %v543 = vsub.s32 3, %v542
  %v544 = vrot.slane %v505, %v543
  %v545 = vlaneseq
  %v546 = vshrl.u32 %v545, 7
  %v547 = vsub.s32 3, %v546
  %v548 = vrot.slane %v506, %v547
  %v549 = vmul.f32 %v84, %v544
  %v550 = vmul.f32 %v84, %v548
  %v551 = vadd.f32 %v539, %v549
  %v552 = vadd.f32 %v540, %v550
  %v553 = vlaneseq
  %v554 = vshrl.u32 %v553, 7
  %v555 = vsub.s32 4, %v554
  %v556 = vrot.slane %v505, %v555
  %v557 = vlaneseq
  %v558 = vshrl.u32 %v557, 7
  %v559 = vsub.s32 4, %v558
  %v560 = vrot.slane %v506, %v559
  %v561 = vmul.f32 %v100, %v556
  %v562 = vmul.f32 %v100, %v560
  %v563 = vadd.f32 %v551, %v561
  %v564 = vadd.f32 %v552, %v562
  %v565 = vlaneseq
  %v566 = vshrl.u32 %v565, 7
  %v567 = vsub.s32 5, %v566
  %v568 = vrot.slane %v505, %v567
  %v569 = vlaneseq
  %v570 = vshrl.u32 %v569, 7
  %v571 = vsub.s32 5, %v570
  %v572 = vrot.slane %v506, %v571
  %v573 = vmul.f32 %v116, %v568
  %v574 = vmul.f32 %v116, %v572
  %v575 = vadd.f32 %v563, %v573
  %v576 = vadd.f32 %v564, %v574
  %v577 = vlaneseq
  %v578 = vshrl.u32 %v577, 7
  %v579 = vsub.s32 6, %v578
  %v580 = vrot.slane %v505, %v579
  %v581 = vlaneseq
  %v582 = vshrl.u32 %v581, 7
  %v583 = vsub.s32 6, %v582
  %v584 = vrot.slane %v506, %v583
  %v585 = vmul.f32 %v132, %v580
  %v586 = vmul.f32 %v132, %v584
  %v587 = vadd.f32 %v575, %v585
  %v588 = vadd.f32 %v576, %v586
  %v589 = vlaneseq
  %v590 = vshrl.u32 %v589, 7
  %v591 = vsub.s32 7, %v590
  %v592 = vrot.slane %v505, %v591
  %v593 = vlaneseq
  %v594 = vshrl.u32 %v593, 7
  %v595 = vsub.s32 7, %v594
  %v596 = vrot.slane %v506, %v595
  %v597 = vmul.f32 %v148, %v592
  %v598 = vmul.f32 %v148, %v596
  %v599 = vadd.f32 %v587, %v597
  %v600 = vadd.f32 %v588, %v598
  %v601 = vadd.f32 %v599, %v164
  %v602 = vadd.f32 %v600, %v164
  %v603 = vmax.f32 %v601, 0.0
  %v604 = vmax.f32 %v602, 0.0
  %v605 = vlaneseq
  %v606 = vshrl.u32 %v605, 7
  %v607 = vsub.s32 0, %v606
  %v608 = vrot.slane %v603, %v607
  %v609 = vlaneseq
  %v610 = vshrl.u32 %v609, 7
  %v611 = vsub.s32 0, %v610
  %v612 = vrot.slane %v604, %v611
  %v613 = vmul.f32 %v271, %v608
  %v614 = vmul.f32 %v271, %v612
  %v615 = vlaneseq
  %v616 = vshrl.u32 %v615, 7
  %v617 = vsub.s32 1, %v616
  %v618 = vrot.slane %v603, %v617
  %v619 = vlaneseq
  %v620 = vshrl.u32 %v619, 7
  %v621 = vsub.s32 1, %v620
  %v622 = vrot.slane %v604, %v621
  %v623 = vmul.f32 %v285, %v618
  %v624 = vmul.f32 %v285, %v622
  %v625 = vadd.f32 %v613, %v623
  %v626 = vadd.f32 %v614, %v624
  %v627 = vlaneseq
  %v628 = vshrl.u32 %v627, 7
  %v629 = vsub.s32 2, %v628
  %v630 = vrot.slane %v603, %v629
  %v631 = vlaneseq
  %v632 = vshrl.u32 %v631, 7
  %v633 = vsub.s32 2, %v632
  %v634 = vrot.slane %v604, %v633
  %v635 = vmul.f32 %v301, %v630
  %v636 = vmul.f32 %v301, %v634
  %v637 = vadd.f32 %v625, %v635
  %v638 = vadd.f32 %v626, %v636
  %v639 = vlaneseq
  %v640 = vshrl.u32 %v639, 7
  %v641 = vsub.s32 3, %v640
  %v642 = vrot.slane %v603, %v641
  %v643 = vlaneseq
  %v644 = vshrl.u32 %v643, 7
  %v645 = vsub.s32 3, %v644
  %v646 = vrot.slane %v604, %v645
  %v647 = vmul.f32 %v317, %v642
  %v648 = vmul.f32 %v317, %v646
  %v649 = vadd.f32 %v637, %v647
  %v650 = vadd.f32 %v638, %v648
  %v651 = vlaneseq
  %v652 = vshrl.u32 %v651, 7
  %v653 = vsub.s32 4, %v652
  %v654 = vrot.slane %v603, %v653
  %v655 = vlaneseq
  %v656 = vshrl.u32 %v655, 7
  %v657 = vsub.s32 4, %v656
  %v658 = vrot.slane %v604, %v657
  %v659 = vmul.f32 %v333, %v654
  %v660 = vmul.f32 %v333, %v658
  %v661 = vadd.f32 %v649, %v659
  %v662 = vadd.f32 %v650, %v660
  %v663 = vlaneseq
  %v664 = vshrl.u32 %v663, 7
  %v665 = vsub.s32 5, %v664
  %v666 = vrot.slane %v603, %v665
  %v667 = vlaneseq
  %v668 = vshrl.u32 %v667, 7
  %v669 = vsub.s32 5, %v668
  %v670 = vrot.slane %v604, %v669
  %v671 = vmul.f32 %v349, %v666
  %v672 = vmul.f32 %v349, %v670
  %v673 = vadd.f32 %v661, %v671
  %v674 = vadd.f32 %v662, %v672
  %v675 = vlaneseq
  %v676 = vshrl.u32 %v675, 7
  %v677 = vsub.s32 6, %v676
  %v678 = vrot.slane %v603, %v677
  %v679 = vlaneseq
  %v680 = vshrl.u32 %v679, 7
  %v681 = vsub.s32 6, %v680
  %v682 = vrot.slane %v604, %v681
  %v683 = vmul.f32 %v365, %v678
  %v684 = vmul.f32 %v365, %v682
  %v685 = vadd.f32 %v673, %v683
  %v686 = vadd.f32 %v674, %v684
  %v687 = vlaneseq
  %v688 = vshrl.u32 %v687, 7
  %v689 = vsub.s32 7, %v688
  %v690 = vrot.slane %v603, %v689
  %v691 = vlaneseq
  %v692 = vshrl.u32 %v691, 7
  %v693 = vsub.s32 7, %v692
  %v694 = vrot.slane %v604, %v693
  %v695 = vmul.f32 %v381, %v690
  %v696 = vmul.f32 %v381, %v694
  %v697 = vadd.f32 %v685, %v695
  %v698 = vadd.f32 %v686, %v696
  %v699 = vadd.f32 %v697, %v397
  %v700 = vadd.f32 %v698, %v397
  %v701 = vadd.f32 %v699, %v401
  %v702 = vadd.f32 %v700, %v402
  %703 = vst [vmem:[%s3] sm:$0xff] %v701
  %vm704 = vcmask 588800
  %705 = vst.msk [vmem:[%s3 + $0x8] sm:$0xff] %vm704, %v702
  // Predicated region
  $region14: #{maskbranch19_30_forward.1} parent=0 // pred_check
    _
  $region15: #{maskbranch19_30_forward.1} parent=0 // pred_check_branch
    %707 = sbr.rel (0) target = $region17
  $region16: #{maskbranch19_30_forward.1} parent=0 // pred_region
    _
  $region17: #{maskbranch19_30_forward.1} parent=0 // pred_fallthru
    _
  // Predicated region
  $region18: #{maskbranch19_30_forward.1} parent=0 // pred_check
    _
  $region19: #{maskbranch19_30_forward.1} parent=0 // pred_check_branch
    %709 = sbr.rel (0) target = $region21
  $region20: #{maskbranch19_30_forward.1} parent=0 // pred_region
    _
  $region21: #{maskbranch19_30_forward.1} parent=0 // pred_fallthru
    _

</llo_original>
